<compile_context>
chip_gen: v7x
topology: tpu7x:2x2x1
jax: 0.10.0
libtpu: 0.0.40
codegen_flags: <defaults>
</compile_context>

<pallas_src>
import functools

import jax
import jax.numpy as jnp
from jax import lax
from jax.experimental import pallas as pl
from jax.experimental.pallas import tpu as pltpu


# Safe on v5e/v6e (128 MiB physical) and v7x (64 MiB physical).
_VMEM_LIMIT_BYTES = 48 * 1024 * 1024
# Target double-buffered working set per pipeline stage.
_PIPELINE_BUDGET_BYTES = 12 * 1024 * 1024


def _pick_block_samples(n_samples, bytes_per_sample):
    """Samples per grid step: as big as the VMEM budget allows, but keep >=2 grid steps
    when possible so the 'parallel' axis can shard across both v7x TensorCores."""
    per_sample = 2 * max(int(bytes_per_sample), 1)  # double-buffered in + out
    b = max(1, _PIPELINE_BUDGET_BYTES // per_sample)
    b = int(min(b, n_samples))
    if n_samples >= 2:
        b = min(b, -(-n_samples // 2))
    return max(1, b)


def _pad_batch(a, n_pad):
    n = a.shape[0]
    if n_pad == n:
        return a
    pad = [(0, n_pad - n)] + [(0, 0)] * (a.ndim - 1)
    return jnp.pad(a, pad)


# ----------------------------------------------------------------------------
# Kernel 1: covariance + shrinkage (B samples per grid step)
# ----------------------------------------------------------------------------
def _cov_kernel(coef_ref, x_ref, out_ref, *, shrinkage_strategy, fact):
    xb = x_ref[...].astype(jnp.float32)                 # (B, dim, n_assets)
    n_assets = xb.shape[-1]

    # Center over the observation axis (torch: m -= mean(m, dim=1) with m = x[i].T).
    xc = xb - jnp.mean(xb, axis=1, keepdims=True)

    # Batched Gram matrix, contracting the observation axis directly on the MXU
    # (no materialized transpose):  gram[b, a, c] = sum_d xc[b, d, a] * xc[b, d, c]
    gram = lax.dot_general(
        xc, xc,
        dimension_numbers=(((1,), (1,)), ((0,), (0,))),
        preferred_element_type=jnp.float32)

    factf = jnp.float32(fact)
    if shrinkage_strategy is None:
        out = factf * gram
    else:
        c = coef_ref[...].astype(jnp.float32)            # (B, 1, 1)
        row = lax.broadcasted_iota(jnp.int32, (1, n_assets, n_assets), 1)
        col = lax.broadcasted_iota(jnp.int32, (1, n_assets, n_assets), 2)
        eye = row == col
        if shrinkage_strategy == "diagonal":
            # c*s + (1-c)*diag(s) == s on the diagonal, c*s off-diagonal  (s = fact*gram)
            out = gram * jnp.where(eye, factf, factf * c)
        elif shrinkage_strategy == "identity":
            out = (factf * c) * gram + jnp.where(eye, 1.0 - c, jnp.float32(0.0))
        elif shrinkage_strategy == "scaled_identity":
            diag = jnp.where(eye, gram, jnp.float32(0.0))
            mean_diag = (factf / n_assets) * jnp.sum(diag, axis=(1, 2), keepdims=True)
            out = (factf * c) * gram + jnp.where(
                eye, (1.0 - c) * mean_diag, jnp.float32(0.0))
        else:  # pragma: no cover - validated in wrapper
            raise ValueError(f"Unrecognized shrinkage strategy {shrinkage_strategy}")

    out_ref[...] = out.astype(out_ref.dtype)


def _covariance_pallas(x, shrinkage_coef, shrinkage_strategy):
    n_samples, dim, n_assets = x.shape
    itemsize = jnp.dtype(x.dtype).itemsize
    bytes_per_sample = (dim * n_assets) * itemsize + (n_assets * n_assets) * itemsize + 4
    b = _pick_block_samples(n_samples, bytes_per_sample)
    n_pad = pl.cdiv(n_samples, b) * b

    # NOTE: for very large `dim` a single sample block may exceed VMEM; that case would
    # need a K-tiled grid axis over `dim` with an f32 accumulator (not needed here).
    x_p = _pad_batch(x, n_pad)
    coef_p = _pad_batch(
        shrinkage_coef.reshape(n_samples, 1, 1).astype(jnp.float32), n_pad)

    kernel = functools.partial(
        _cov_kernel, shrinkage_strategy=shrinkage_strategy, fact=1.0 / (dim - 1))

    cov = pl.pallas_call(
        kernel,
        out_shape=jax.ShapeDtypeStruct((n_pad, n_assets, n_assets), x.dtype),
        grid=(n_pad // b,),
        in_specs=[
            pl.BlockSpec((b, 1, 1), lambda g: (g, 0, 0)),            # shrinkage coef
            pl.BlockSpec((b, dim, n_assets), lambda g: (g, 0, 0)),   # x sample block
        ],
        out_specs=pl.BlockSpec((b, n_assets, n_assets), lambda g: (g, 0, 0)),
        compiler_params=pltpu.CompilerParams(
            dimension_semantics=("parallel",),
            vmem_limit_bytes=_VMEM_LIMIT_BYTES),
    )(coef_p, x_p)
    return cov[:n_samples]


# ----------------------------------------------------------------------------
# Kernel 2: PSD matrix square root from SVD factors (B samples per grid step)
# ----------------------------------------------------------------------------
def _sqrt_kernel(vh_ref, s_ref, out_ref):
    vh = vh_ref[...].astype(jnp.float32)     # (B, n, n) rows = right singular vectors
    s = s_ref[...].astype(jnp.float32)       # (B, n, 1)
    n_assets = vh.shape[-1]

    eps = jnp.finfo(jnp.float32).eps
    good = s > jnp.max(s, axis=1, keepdims=True) * (n_assets * eps)
    # Zeroing small singular values is mathematically identical to deepdow's column
    # truncation for the V*sqrt(S)*V^T product.
    s_sqrt = jnp.sqrt(jnp.where(good, s, jnp.float32(0.0)))

    w = vh * s_sqrt                           # scale each right-singular row
    # out[b,i,j] = sum_k sqrt(s_k) * vh[b,k,i] * vh[b,k,j]  ==  V sqrt(S) V^T
    out = lax.dot_general(
        w, vh,
        dimension_numbers=(((1,), (1,)), ((0,), (0,))),
        preferred_element_type=jnp.float32)
    out_ref[...] = out.astype(out_ref.dtype)


def _sqrt_pallas(vh, s, out_dtype):
    n_samples, n_assets, _ = vh.shape
    itemsize = jnp.dtype(jnp.float32).itemsize
    bytes_per_sample = (2 * n_assets * n_assets + n_assets) * itemsize
    b = _pick_block_samples(n_samples, bytes_per_sample)
    n_pad = pl.cdiv(n_samples, b) * b

    vh_p = _pad_batch(vh.astype(jnp.float32), n_pad)
    s_p = _pad_batch(s.reshape(n_samples, n_assets, 1).astype(jnp.float32), n_pad)

    out = pl.pallas_call(
        _sqrt_kernel,
        out_shape=jax.ShapeDtypeStruct((n_pad, n_assets, n_assets), out_dtype),
        grid=(n_pad // b,),
        in_specs=[
            pl.BlockSpec((b, n_assets, n_assets), lambda g: (g, 0, 0)),
            pl.BlockSpec((b, n_assets, 1), lambda g: (g, 0, 0)),
        ],
        out_specs=pl.BlockSpec((b, n_assets, n_assets), lambda g: (g, 0, 0)),
        compiler_params=pltpu.CompilerParams(
            dimension_semantics=("parallel",),
            vmem_limit_bytes=_VMEM_LIMIT_BYTES),
    )(vh_p, s_p)
    return out[:n_samples]


# ----------------------------------------------------------------------------
# Module-equivalent wrapper
# ----------------------------------------------------------------------------
def covariance_matrix(
    x,
    shrinkage_coef=None,
    *,
    sqrt=True,
    shrinkage_strategy="diagonal",
    default_shrinkage_coef=0.5,
):
    """JAX/Pallas equivalent of deepdow CovarianceMatrix.forward.

    x: (n_samples, dim, n_assets); returns (n_samples, n_assets, n_assets).
    Requires dim >= 2 (same precondition as the PyTorch original, made explicit).
    """
    n_samples, dim, _ = x.shape
    if dim < 2:
        raise ValueError("Covariance needs at least two observations (dim >= 2).")
    if shrinkage_strategy is not None and shrinkage_strategy not in (
            "diagonal", "identity", "scaled_identity"):
        raise ValueError(f"Unrecognized shrinkage strategy {shrinkage_strategy}")
    if not ((shrinkage_coef is None) ^ (default_shrinkage_coef is None)):
        raise ValueError("Not clear which shrinkage coefficient to use")
    if shrinkage_coef is None:
        shrinkage_coef = jnp.full((n_samples,), default_shrinkage_coef, dtype=jnp.float32)
    shrinkage_coef = jnp.asarray(shrinkage_coef)

    cov = _covariance_pallas(x, shrinkage_coef, shrinkage_strategy)
    if not sqrt:
        return cov

    # TODO(synk): batched SVD has no clean Pallas equivalent; it stays in plain JAX.
    _, s, vh = jnp.linalg.svd(cov.astype(jnp.float32))
    return _sqrt_pallas(vh, s, cov.dtype)


# ----------------------------------------------------------------------------
# Pure-JAX reference for correctness checking
# ----------------------------------------------------------------------------
def _reference(x, coef, strategy, sqrt):
    dim, n_assets = x.shape[1], x.shape[2]
    xc = x - jnp.mean(x, axis=1, keepdims=True)
    s = jnp.einsum("bda,bdc->bac", xc, xc) / (dim - 1)
    if strategy is not None:
        eye = jnp.eye(n_assets, dtype=s.dtype)
        c = coef[:, None, None]
        if strategy == "diagonal":
            stable = eye * s
        elif strategy == "identity":
            stable = jnp.broadcast_to(eye, s.shape)
        elif strategy == "scaled_identity":
            mean_diag = jnp.trace(s, axis1=1, axis2=2)[:, None, None] / n_assets
            stable = eye * mean_diag
        s = c * s + (1 - c) * stable
    if not sqrt:
        return s
    _, sv, vh = jnp.linalg.svd(s)
    good = sv > sv.max(-1, keepdims=True) * n_assets * jnp.finfo(sv.dtype).eps
    sv = jnp.where(good, sv, 0.0)
    v = jnp.swapaxes(vh, -1, -2)
    return (v * jnp.sqrt(sv)[:, None, :]) @ vh


if __name__ == "__main__":
    key = jax.random.PRNGKey(0)
    n_samples, dim, n_assets = 2, 16, 8
    x = jax.random.normal(key, (n_samples, dim, n_assets), dtype=jnp.float32)

    # sqrt path (default module config)
    out = covariance_matrix(
        x, sqrt=True, shrinkage_strategy="diagonal", default_shrinkage_coef=0.5)
    out = jax.block_until_ready(out)
    assert out.shape == (n_samples, n_assets, n_assets)
    assert out.dtype == jnp.float32
    ref = _reference(x, jnp.full((n_samples,), 0.5, jnp.float32), "diagonal", True)
    err = float(jnp.max(jnp.abs(out - ref)))
    assert err < 1e-3, f"sqrt path max abs error {err}"

    # covariance-only path with a different shrinkage strategy
    cov_only = covariance_matrix(
        x, sqrt=False, shrinkage_strategy="scaled_identity", default_shrinkage_coef=0.3)
    cov_only = jax.block_until_ready(cov_only)
    ref_cov = _reference(
        x, jnp.full((n_samples,), 0.3, jnp.float32), "scaled_identity", False)
    err2 = float(jnp.max(jnp.abs(cov_only - ref_cov)))
    assert err2 < 1e-4, f"cov path max abs error {err2}"

    print("KERNEL_OK")
</pallas_src>

<mosaic_0001>
module attributes {stable_mosaic.version = 11 : i64} {
  func.func @_cov_kernel(%arg0: i32, %arg1: memref<1x1x1xf32, #tpu.memory_space<vmem>>, %arg2: memref<1x16x8xf32, #tpu.memory_space<vmem>>, %arg3: memref<1x8x8xf32, #tpu.memory_space<vmem>>) attributes {dimension_semantics = [#tpu.dimension_semantics<parallel>], iteration_bounds = array<i64: 2>, scalar_prefetch = 0 : i64, scratch_operands = 0 : i64, tpu.core_type = #tpu.core_type<tc>, window_params = [{transform_indices = @transform_0, window_bounds = array<i64: 1, 1, 1>}, {transform_indices = @transform_1, window_bounds = array<i64: 1, 16, 8>}, {transform_indices = @transform_2, window_bounds = array<i64: 1, 8, 8>}]} {
    %c0 = arith.constant 0 : index
    %c0_0 = arith.constant 0 : index
    %c0_1 = arith.constant 0 : index
    %0 = vector.load %arg2[%c0, %c0_0, %c0_1] : memref<1x16x8xf32, #tpu.memory_space<vmem>>, vector<1x16x8xf32>
    %cst = arith.constant dense<0.000000e+00> : vector<1x8xf32>
    %1 = vector.multi_reduction <add>, %0, %cst [1] : vector<1x16x8xf32> to vector<1x8xf32>
    %2 = vector.shape_cast %1 : vector<1x8xf32> to vector<1x1x8xf32>
    %cst_2 = arith.constant 1.600000e+01 : f32
    %3 = vector.broadcast %cst_2 : f32 to vector<1x1x8xf32>
    %4 = arith.divf %2, %3 : vector<1x1x8xf32>
    %5 = vector.broadcast %4 : vector<1x1x8xf32> to vector<1x16x8xf32>
    %6 = arith.subf %0, %5 : vector<1x16x8xf32>
    %cst_3 = arith.constant dense<0.000000e+00> : vector<1x8x8xf32>
    %7 = tpu.matmul %6, %6, %cst_3 {dimension_numbers = #tpu.dot_dimension_numbers<[1], [1], [2], [2], [0, 0, 0, 2, 1, 2], [0], [0]>} : vector<1x16x8xf32>, vector<1x16x8xf32>, vector<1x8x8xf32> -> vector<1x8x8xf32>
    %c0_4 = arith.constant 0 : index
    %c0_5 = arith.constant 0 : index
    %c0_6 = arith.constant 0 : index
    %8 = vector.load %arg1[%c0_4, %c0_5, %c0_6] : memref<1x1x1xf32, #tpu.memory_space<vmem>>, vector<1x1x1xf32>
    %9 = tpu.iota {dimensions = array<i32: 1>} : vector<1x8x8xi32>
    %10 = tpu.iota {dimensions = array<i32: 2>} : vector<1x8x8xi32>
    %11 = arith.cmpi eq, %9, %10 : vector<1x8x8xi32>
    %cst_7 = arith.constant 0.0666666701 : f32
    %12 = vector.broadcast %cst_7 : f32 to vector<1x1x1xf32>
    %13 = arith.mulf %12, %8 : vector<1x1x1xf32>
    %cst_8 = arith.constant 0.0666666701 : f32
    %14 = vector.broadcast %cst_8 : f32 to vector<1x8x8xf32>
    %15 = vector.shape_cast %13 : vector<1x1x1xf32> to vector<1x1x1xf32>
    %16 = vector.broadcast %15 : vector<1x1x1xf32> to vector<1x8x8xf32>
    %17 = arith.select %11, %14, %16 : vector<1x8x8xi1>, vector<1x8x8xf32>
    %18 = arith.mulf %7, %17 : vector<1x8x8xf32>
    %c0_9 = arith.constant 0 : index
    %c0_10 = arith.constant 0 : index
    %c0_11 = arith.constant 0 : index
    %19 = vector.load %arg3[%c0_9, %c0_10, %c0_11] : memref<1x8x8xf32, #tpu.memory_space<vmem>>, vector<1x8x8xf32>
    tpu.vector_store %arg3[%c0_9, %c0_10, %c0_11], %18 {strides = array<i32>} : memref<1x8x8xf32, #tpu.memory_space<vmem>>, vector<1x8x8xf32>,
    return
  }
  func.func @transform_0(%arg0: i32) -> (i32, i32, i32) {
    %c0_i32 = arith.constant 0 : i32
    %c0_i32_0 = arith.constant 0 : i32
    %c0_i32_1 = arith.constant 0 : i32
    return %arg0, %c0_i32, %c0_i32_0 : i32, i32, i32
  }
  func.func @transform_1(%arg0: i32) -> (i32, i32, i32) {
    %c0_i32 = arith.constant 0 : i32
    %c0_i32_0 = arith.constant 0 : i32
    %c0_i32_1 = arith.constant 0 : i32
    return %arg0, %c0_i32, %c0_i32_0 : i32, i32, i32
  }
  func.func @transform_2(%arg0: i32) -> (i32, i32, i32) {
    %c0_i32 = arith.constant 0 : i32
    %c0_i32_0 = arith.constant 0 : i32
    %c0_i32_1 = arith.constant 0 : i32
    return %arg0, %c0_i32, %c0_i32_0 : i32, i32, i32
  }
}

</mosaic_0001>

<llo_original>
// kernel: tpu_custom_call.1
$region0: #{tpu_custom_call.1}
  #allocation0 [shape = 'u32[]', space=smem, size = 0x4, offset = 0x4, fixed_abs, tag = 'smem constant byte address 0x4 - core index']
  #allocation1 [shape = 'u32[144,128]{1,0:T(1,128)}', space=vmem, size = 0x12000, scoped, tag = 'internal scratch']
  %s0 = inlined_call_operand.vmem [shape: f32[2,1,1], index: 0, kind: input, shape index: {}]
  %s1 = inlined_call_operand.vmem [shape: f32[2,16,8], index: 1, kind: input, shape index: {}]
  %s2 = inlined_call_operand.hbm [shape: f32[2,8,8], index: 2, kind: output, shape index: {}]
  %s3 = sld [smem:[#allocation0]]
  $region41: #{tpu_custom_call.1} parent=0
    _
  %s5 = ssub.s32 1, %s3
  %s6 = scalar_select 0, %s5, %s3
  $region1: #{tpu_custom_call.1} parent=0
    #allocation2 [shape = 'u8[8192]{0}', space=vmem, size = 0x2000, scoped, tag = 'output window, operand 0']
    #allocation3 [shape = 's32[2]{0}', space=sflag, size = 0x8, scoped, tag = 'scoped memory for tpu_custom_call.1']
    %7 = vsyncpa [#allocation3], 0
    %s8 = scalar_lea.sflag [#allocation3], 1
    %9 = vsyncpa %s8, 0
    loop: start=0, step=1, limit=4
    $region2: #{tpu_custom_call.1} parent=1 // loop_pre_header
      _
    $region3: #{tpu_custom_call.1} parent=1 // loop_header
      %s11 = sphi 0, %s15
      %p12 = scmp.ge.s32.totalorder %s11, 4
      %s21 = sphi 0, %s23
      %s24 = sphi 0, %s21
      %s25 = sphi 0, %s24
      %s41 = sphi 0, %s25
      %s47 = sphi 0, %s49
      %s50 = sphi 0, %s47
      %s51 = sphi 0, %s50
      %s67 = sphi 0, %s51
      %s73 = sphi 0, %s75
      %s76 = sphi 0, %s73
      %s77 = sphi 0, %s76
      %s93 = sphi 0, %s77
    $region4: #{tpu_custom_call.1} parent=1 // loop_header_branch
      %14 = sbr.rel (%p12) target = $region8
    $region5: #{tpu_custom_call.1} parent=1 // loop_body
      %s16 = ssub.s32 %s11, 1
      %s17 = ssub.s32 %s11, 2
      %s18 = sadd.s32 %s11, 1
      %s19 = ssub.s32 %s11, %s18
      %p20 = scmp.eq.s32.totalorder %s19, 0
      %s22 = sadd.s32 %s21, 1
      %s23 = scalar_select %p20, %s21, %s22
      %p26 = pneg %p20
      %p27 = scmp.eq.s32.totalorder %s11, 1
      %p28 = por %p26, %p27
      %p29 = scmp.ne.s32.totalorder %s21, %s24
      %p30 = scmp.eq.s32.totalorder %s11, 0
      %p31 = por %p29, %p30
      %p32 = scmp.ne.s32.totalorder %s21, %s24
      %p33 = scmp.eq.s32.totalorder %s16, 1
      %p34 = por %p32, %p33
      %p35 = scmp.ne.s32.totalorder %s24, %s25
      %p36 = scmp.eq.s32.totalorder %s16, 0
      %p37 = por %p35, %p36
      %p38 = scmp.ne.s32.totalorder %s24, %s25
      %p39 = scmp.eq.s32.totalorder %s17, 1
      %p40 = por %p38, %p39
      %p42 = scmp.ne.s32.totalorder %s25, %s41
      %p43 = scmp.eq.s32.totalorder %s17, 0
      %p44 = por %p42, %p43
      %s45 = ssub.s32 %s11, %s18
      %p46 = scmp.eq.s32.totalorder %s45, 0
      %s48 = sadd.s32 %s47, 1
      %s49 = scalar_select %p46, %s47, %s48
      %p52 = pneg %p46
      %p53 = scmp.eq.s32.totalorder %s11, 1
      %p54 = por %p52, %p53
      %p55 = scmp.ne.s32.totalorder %s47, %s50
      %p56 = scmp.eq.s32.totalorder %s11, 0
      %p57 = por %p55, %p56
      %p58 = scmp.ne.s32.totalorder %s47, %s50
      %p59 = scmp.eq.s32.totalorder %s16, 1
      %p60 = por %p58, %p59
      %p61 = scmp.ne.s32.totalorder %s50, %s51
      %p62 = scmp.eq.s32.totalorder %s16, 0
      %p63 = por %p61, %p62
      %p64 = scmp.ne.s32.totalorder %s50, %s51
      %p65 = scmp.eq.s32.totalorder %s17, 1
      %p66 = por %p64, %p65
      %p68 = scmp.ne.s32.totalorder %s51, %s67
      %p69 = scmp.eq.s32.totalorder %s17, 0
      %p70 = por %p68, %p69
      %s71 = ssub.s32 %s11, %s18
      %p72 = scmp.eq.s32.totalorder %s71, 0
      %s74 = sadd.s32 %s73, 1
      %s75 = scalar_select %p72, %s73, %s74
      %p78 = pneg %p72
      %p79 = scmp.eq.s32.totalorder %s11, 1
      %p80 = por %p78, %p79
      %p81 = scmp.ne.s32.totalorder %s73, %s76
      %p82 = scmp.eq.s32.totalorder %s11, 0
      %p83 = por %p81, %p82
      %p84 = scmp.ne.s32.totalorder %s73, %s76
      %p85 = scmp.eq.s32.totalorder %s16, 1
      %p86 = por %p84, %p85
      %p87 = scmp.ne.s32.totalorder %s76, %s77
      %p88 = scmp.eq.s32.totalorder %s16, 0
      %p89 = por %p87, %p88
      %p90 = scmp.ne.s32.totalorder %s76, %s77
      %p91 = scmp.eq.s32.totalorder %s17, 1
      %p92 = por %p90, %p91
      %p94 = scmp.ne.s32.totalorder %s77, %s93
      %p95 = scmp.eq.s32.totalorder %s17, 0
      %p96 = por %p94, %p95
      %p97 = scmp.le.s32.totalorder 1, %s11
      %p98 = scmp.lt.s32.totalorder %s11, 3
      %p99 = pnand %p97, %p98
      %p100 = pneg %p99
      // Predicated region
      $region9: #{tpu_custom_call.1} parent=5 // pred_check
        _
      $region10: #{tpu_custom_call.1} parent=5 // pred_check_branch
        %102 = sbr.rel (%p99) target = $region12
      $region11: #{tpu_custom_call.1} parent=5 // pred_region
        %s103 = ssub.s32 %s11, 1
      $region12: #{tpu_custom_call.1} parent=5 // pred_fallthru
        _
      %p104 = scmp.lt.s32.totalorder %s11, 2
      // Predicated region
      $region13: #{tpu_custom_call.1} parent=5 // pred_check
        %p105 = pneg %p104
      $region14: #{tpu_custom_call.1} parent=5 // pred_check_branch
        %107 = sbr.rel (%p105) target = $region16
      $region15: #{tpu_custom_call.1} parent=5 // pred_region
        // Predicated region
        $region17: #{tpu_custom_call.1} parent=15 // pred_check
          %p108 = pneg %p31
        $region18: #{tpu_custom_call.1} parent=15 // pred_check_branch
          %110 = sbr.rel (%p108) target = $region20
        $region19: #{tpu_custom_call.1} parent=15 // pred_region
          %p111 = scmp.lt.s32.totalorder %s11, 1
          %s112 = scalar_select %p111, %s11, 1
          %s113 = scalar_lea.vmem %s0, %s112
        $region20: #{tpu_custom_call.1} parent=15 // pred_fallthru
          _
        // Predicated region
        $region21: #{tpu_custom_call.1} parent=15 // pred_check
          %p114 = pneg %p57
        $region22: #{tpu_custom_call.1} parent=15 // pred_check_branch
          %116 = sbr.rel (%p114) target = $region24
        $region23: #{tpu_custom_call.1} parent=15 // pred_region
          %p117 = scmp.lt.s32.totalorder %s11, 1
          %s118 = scalar_select %p117, %s11, 1
          %s119 = smul.addr %s118, 2
          %s120 = smul.addr %s119, 8
          %s121 = scalar_lea.vmem %s1, %s120
        $region24: #{tpu_custom_call.1} parent=15 // pred_fallthru
          _
      $region16: #{tpu_custom_call.1} parent=5 // pred_fallthru
        _
      %p122 = scmp.le.s32.totalorder 1, %s11
      %p123 = scmp.lt.s32.totalorder %s11, 3
      %p124 = pnand %p122, %p123
      %p125 = pneg %p124
      // Predicated region
      $region25: #{tpu_custom_call.1} parent=5 // pred_check
        _
      $region26: #{tpu_custom_call.1} parent=5 // pred_check_branch
        %127 = sbr.rel (%p124) target = $region28
      $region27: #{tpu_custom_call.1} parent=5 // pred_region
        %s128 = ssub.s32 %s11, 1
        %p129 = scmp.lt.s32.totalorder %s16, 1
        %s130 = scalar_select %p129, %s16, 1
        %s131 = scalar_lea.vmem %s0, %s130
        %p132 = pneg %p37
        %p133 = pneg %p34
        %p134 = scmp.lt.s32.totalorder %s16, 1
        %s135 = scalar_select %p134, %s16, 1
        %s136 = smul.addr %s135, 2
        %s137 = smul.addr %s136, 8
        %s138 = scalar_lea.vmem %s1, %s137
        %p139 = pneg %p63
        %p140 = pneg %p60
        %p141 = pneg %p89
        %p142 = pneg %p86
        %s143 = sand.u32 %s76, 1
        %s144 = scalar_lea.sflag [#allocation3], %s143
        %s145 = sand.u32 %s76, 1
        %s146 = smul.addr %s145, 8
        %s147 = scalar_lea.vmem [#allocation2], %s146
        %p148 = scmp.lt.s32.totalorder %s16, 1
        %s149 = scalar_select %p148, %s16, 1
        %s150 = scalar_lea.vmem %s0, %s149
        %p151 = scmp.lt.s32.totalorder %s16, 1
        %s152 = scalar_select %p151, %s16, 1
        %s153 = smul.addr %s152, 2
        %s154 = smul.addr %s153, 8
        %s155 = scalar_lea.vmem %s1, %s154
        %v156 = vld [vmem:[%s155] sm:$0xff]
        %v157 = vld [vmem:[%s155 + $0x8] sm:$0xff]
        %vm158 = vcmask 64512
        %v159 = vsel %vm158, %v156, 0.0
        %v160 = vsel %vm158, %v157, 0.0
        %v161 = vadd.f32 %v159, %v160
        %v162 = vrot.slane %v161, 4
        %v163 = vadd.f32 %v161, %v162
        %v164 = vrot.slane %v163, 2
        %v165 = vadd.f32 %v163, %v164
        %v166 = vrot.slane %v165, 1
        %v167 = vadd.f32 %v165, %v166
        %v168 = vrcp.pop 16.0
        %v169 = vmul.f32 %v167, %v168
        %v170 = vsub.f32 %v156, %v169
        %v171 = vsub.f32 %v157, %v169
        %172 = vxpose.xlu0.b32.start [1/16] %v170, 128
        %173 = vxpose.xlu0.b32.cont [2/16] %v171, 128
        %174 = vxpose.xlu0.b32.cont [3/16] 0.0, 128
        %175 = vxpose.xlu0.b32.cont [4/16] 0.0, 128
        %176 = vxpose.xlu0.b32.cont [5/16] 0.0, 128
        %177 = vxpose.xlu0.b32.cont [6/16] 0.0, 128
        %178 = vxpose.xlu0.b32.cont [7/16] 0.0, 128
        %179 = vxpose.xlu0.b32.cont [8/16] 0.0, 128
        %180 = vxpose.xlu0.b32.cont [9/16] 0.0, 128
        %181 = vxpose.xlu0.b32.cont [10/16] 0.0, 128
        %182 = vxpose.xlu0.b32.cont [11/16] 0.0, 128
        %183 = vxpose.xlu0.b32.cont [12/16] 0.0, 128
        %184 = vxpose.xlu0.b32.cont [13/16] 0.0, 128
        %185 = vxpose.xlu0.b32.cont [14/16] 0.0, 128
        %186 = vxpose.xlu0.b32.cont [15/16] 0.0, 128
        %187 = vxpose.xlu0.b32.end [16/16] 0.0, 128
        %v188 = vpop.trf.xlu0
        %v189 = vpop.trf.xlu0
        %v190 = vpop.trf.xlu0
        %v191 = vpop.trf.xlu0
        %v192 = vpop.trf.xlu0
        %v193 = vpop.trf.xlu0
        %v194 = vpop.trf.xlu0
        %v195 = vpop.trf.xlu0
        %v196 = vpop.trf.xlu0
        %v197 = vpop.trf.xlu0
        %v198 = vpop.trf.xlu0
        %v199 = vpop.trf.xlu0
        %v200 = vpop.trf.xlu0
        %v201 = vpop.trf.xlu0
        %v202 = vpop.trf.xlu0
        %v203 = vpop.trf.xlu0
        %vm204 = vcmask 130048
        %v206 = vsel %vm204, %v188, 0
        %208 = vmatprep.subr.mxu0 0.0
        %209 = vmatpush1.msra.mxu0 %v170
        %210 = vmatprep.subr.mxu0 0.0
        %211 = vmatpush1.msra.mxu0 %v171
        %212 = vmatprep.subr.mxu0 0.0
        %213 = vmatpush1.msra.mxu0 0.0
        %214 = vmatprep.subr.mxu0 0.0
        %215 = vmatpush1.msra.mxu0 0.0
        %216 = vmatprep.subr.mxu0 0.0
        %217 = vmatpush1.msra.mxu0 0.0
        %218 = vmatprep.subr.mxu0 0.0
        %219 = vmatpush1.msra.mxu0 0.0
        %220 = vmatprep.subr.mxu0 0.0
        %221 = vmatpush1.msra.mxu0 0.0
        %222 = vmatprep.subr.mxu0 0.0
        %223 = vmatpush1.msra.mxu0 0.0
        %224 = vmatprep.subr.mxu0 0.0
        %225 = vmatpush1.msra.mxu0 0.0
        %226 = vmatprep.subr.mxu0 0.0
        %227 = vmatpush1.msra.mxu0 0.0
        %228 = vmatprep.subr.mxu0 0.0
        %229 = vmatpush1.msra.mxu0 0.0
        %230 = vmatprep.subr.mxu0 0.0
        %231 = vmatpush1.msra.mxu0 0.0
        %232 = vmatprep.subr.mxu0 0.0
        %233 = vmatpush1.msra.mxu0 0.0
        %234 = vmatprep.subr.mxu0 0.0
        %235 = vmatpush1.msra.mxu0 0.0
        %236 = vmatprep.subr.mxu0 0.0
        %237 = vmatpush1.msra.mxu0 0.0
        %238 = vmatprep.subr.mxu0 0.0
        %239 = vmatpush1.msra.mxu0 0.0
        %240 = vmatprep.subr.mxu0 0.0
        %241 = vmatpush1.msra.mxu0 0.0
        %242 = vmatprep.subr.mxu0 0.0
        %243 = vmatpush1.msra.mxu0 0.0
        %244 = vmatprep.subr.mxu0 0.0
        %245 = vmatpush1.msra.mxu0 0.0
        %246 = vmatprep.subr.mxu0 0.0
        %247 = vmatpush1.msra.mxu0 0.0
        %248 = vmatprep.subr.mxu0 0.0
        %249 = vmatpush1.msra.mxu0 0.0
        %250 = vmatprep.subr.mxu0 0.0
        %251 = vmatpush1.msra.mxu0 0.0
        %252 = vmatprep.subr.mxu0 0.0
        %253 = vmatpush1.msra.mxu0 0.0
        %254 = vmatprep.subr.mxu0 0.0
        %255 = vmatpush1.msra.mxu0 0.0
        %256 = vmatprep.subr.mxu0 0.0
        %257 = vmatpush1.msra.mxu0 0.0
        %258 = vmatprep.subr.mxu0 0.0
        %259 = vmatpush1.msra.mxu0 0.0
        %260 = vmatprep.subr.mxu0 0.0
        %261 = vmatpush1.msra.mxu0 0.0
        %262 = vmatprep.subr.mxu0 0.0
        %263 = vmatpush1.msra.mxu0 0.0
        %264 = vmatprep.subr.mxu0 0.0
        %265 = vmatpush1.msra.mxu0 0.0
        %266 = vmatprep.subr.mxu0 0.0
        %267 = vmatpush1.msra.mxu0 0.0
        %268 = vmatprep.subr.mxu0 0.0
        %269 = vmatpush1.msra.mxu0 0.0
        %270 = vmatprep.subr.mxu0 0.0
        %271 = vmatpush1.msra.mxu0 0.0
        %272 = vmatprep.mubr.f32.mxu0 0.0
        %273 = vmatmul.mubr.f32.gmra.mrb[0].mxu0 %v206
        %v274 = vpop.f32.mrb[0].mxu0
        %v275 = vadd.f32 0.0, %v274
        %v276 = vpop.f32.mrb[0].mxu0
        %277 = vdwg.mxu0
        %v278 = vld [vmem:[%s150] sm:$0x1]
        %v279 = vlaneseq
        %v280 = vshrl.u32 %v279, 7
        %v281 = vlaneseq
        %v282 = vand.u32 %v281, 127
        %vm283 = vcmp.eq.s32.totalorder %v280, %v282
        %v284 = vmul.f32 %v278, 0.06666667
        %v286 = vlaneseq
        %v287 = vshrl.u32 %v286, 7
        %v288 = vsub.s32 0, %v287
        %v289 = vrot.slane %v284, %v288
        %290 = vset.pattern.permute.xlu0 0
        %291 = vperm.xlu0 %290, %v289
        %v292 = vpop.permute.xlu0 %291
        %v294 = vsel %vm283, 0.06666667, %v292
        %v295 = vmul.f32 %v275, %v294
        %296 = vst.msk [vmem:[%s147] sm:$0xff] %vm158, %v295
        %s297 = sand.u32 %s76, 1
        %s298 = scalar_lea.sflag [#allocation3], %s297
        %s299 = sand.u32 %s76, 1
        %s300 = smul.addr %s299, 8
        %s301 = scalar_lea.vmem [#allocation2], %s300
        // Predicated region
        $region29: #{tpu_custom_call.1} parent=27 // pred_check
          %p302 = pneg %p86
        $region30: #{tpu_custom_call.1} parent=27 // pred_check_branch
          %304 = sbr.rel (%p302) target = $region32
        $region31: #{tpu_custom_call.1} parent=27 // pred_region
          %s306 = ssub.s32 128, 128
          %307 = vsyncadd %s298, %s306
          %s308 = smul.addr %s16, 128
          %s309 = scalar_lea.hbm %s2, %s308
          %s311 = sshll.u32 %s301, 4
          %s312 = int_to_ptr.vmem [resolvable:$true] %s311
          %314 = dma.vmem_to_hbm [thread:$0]  %s312, 128, %s309, %s298
        $region32: #{tpu_custom_call.1} parent=27 // pred_fallthru
          _
      $region28: #{tpu_custom_call.1} parent=5 // pred_fallthru
        _
      %p315 = scmp.le.s32.totalorder 2, %s11
      // Predicated region
      $region33: #{tpu_custom_call.1} parent=5 // pred_check
        %p316 = pneg %p315
      $region34: #{tpu_custom_call.1} parent=5 // pred_check_branch
        %318 = sbr.rel (%p316) target = $region36
      $region35: #{tpu_custom_call.1} parent=5 // pred_region
        %s319 = ssub.s32 %s11, 2
        // Predicated region
        $region37: #{tpu_custom_call.1} parent=35 // pred_check
          %p320 = pneg %p92
        $region38: #{tpu_custom_call.1} parent=35 // pred_check_branch
          %322 = sbr.rel (%p320) target = $region40
        $region39: #{tpu_custom_call.1} parent=35 // pred_region
          %s323 = sand.u32 %s77, 1
          %s324 = scalar_lea.sflag [#allocation3], %s323
          %s325 = sand.u32 %s77, 1
          %s326 = smul.addr %s325, 8
          %s327 = scalar_lea.vmem [#allocation2], %s326
          %328 = dma.done %s324, 128
        $region40: #{tpu_custom_call.1} parent=35 // pred_fallthru
          _
      $region36: #{tpu_custom_call.1} parent=5 // pred_fallthru
        _
    $region6: #{tpu_custom_call.1} parent=1 // loop_footer
      %s15 = sadd.s32 1, %s11
    $region7: #{tpu_custom_call.1} parent=1 // loop_footer_branch
      %10 = sbr.rel target = $region3
    $region8: #{tpu_custom_call.1} parent=1 // loop_exit
      _
    %329 = vsyncpa [#allocation3], 1
    %s330 = scalar_lea.sflag [#allocation3], 1
    %331 = vsyncpa %s330, 1

</llo_original>
